<compile_context>
chip_gen: v6e
topology: v6e:2x2x1
jax: 0.10.0
libtpu: 0.0.40
codegen_flags: <defaults>
</compile_context>

<pallas_src>
import jax
import jax.numpy as jnp
from jax.experimental import pallas as pl
from jax.experimental.pallas import tpu as pltpu

_PALLAS_MIN_BYTES = 256 * 1024          # below this, plain XLA softmax wins
_VMEM_LIMIT_BYTES = 32 * 1024 * 1024    # safe scoped limit on v5e/v6e/v7x
_TILE_BUDGET_BYTES = 4 * 1024 * 1024    # per-input tile; 2x(in+out) ~= 16 MiB


def _round_up(x, m):
    return ((x + m - 1) // m) * m


def _row_softmax_kernel(x_ref, o_ref):
    """Numerically stable softmax over the last (lane) axis of the block."""
    x = x_ref[...].astype(jnp.float32)
    m = jnp.max(x, axis=-1, keepdims=True)
    e = jnp.exp(x - m)
    s = jnp.sum(e, axis=-1, keepdims=True)
    # Exact per-row divide: negligible cost (amortized over the row lanes)
    # and rows sum to exactly 1 for sampling / reward consumers.
    o_ref[...] = (e / s).astype(o_ref.dtype)


def _pick_row_tile(rows, cols):
    """Row tile: ~4 MiB f32 input tile, >=2 grid steps when splittable
    (engages both v7x TensorCores), second-last dim a multiple of 8."""
    if rows <= 8:
        return rows                      # block dim == full array dim: legal
    tm = max(8, ((_TILE_BUDGET_BYTES // (cols * 4)) // 8) * 8)
    if rows >= 16:
        tm = min(tm, _round_up(pl.cdiv(rows, 2), 8))
    return min(tm, _round_up(rows, 8))


@jax.jit
def _pallas_row_softmax(x):
    """softmax(x, axis=-1) for a 2-D array via one Pallas kernel (no padding)."""
    rows, cols = x.shape
    tm = _pick_row_tile(rows, cols)
    return pl.pallas_call(
        _row_softmax_kernel,
        out_shape=jax.ShapeDtypeStruct((rows, cols), x.dtype),
        grid=(pl.cdiv(rows, tm),),
        in_specs=[pl.BlockSpec((tm, cols), lambda i: (i, 0))],
        out_specs=pl.BlockSpec((tm, cols), lambda i: (i, 0)),
        compiler_params=pltpu.CompilerParams(
            dimension_semantics=("parallel",),   # rows independent -> TC sharding
            vmem_limit_bytes=_VMEM_LIMIT_BYTES,
        ),
    )(x)


def _row_softmax(x):
    """Size-gated dispatch: tiny matrices (the module's 8x16 / 16x8 case) are
    launch-overhead dominated, so fall back to fused XLA softmax there."""
    if x.size * x.dtype.itemsize < _PALLAS_MIN_BYTES:
        return jax.nn.softmax(x, axis=-1)
    return _pallas_row_softmax(x)


class LanguageModuleJAX:
    """JAX/Pallas port of LanguageModule (forward pass only)."""

    def __init__(self, obj, sound, key):
        self.obj, self.sound = obj, sound
        kp, kq = jax.random.split(key)
        # torch.randn equivalent: standard-normal init, deterministic via key.
        self.P = jax.random.normal(kp, (obj, sound), dtype=jnp.float32)
        self.Q = jax.random.normal(kq, (sound, obj), dtype=jnp.float32)

    def forward(self):
        return _row_softmax(self.P), _row_softmax(self.Q)

    # TODO(synk): sample()/rsample()/cal_reward() are RNG-driven Monte-Carlo
    # paths; only forward() is implemented with a Pallas kernel here.


if __name__ == "__main__":
    key = jax.random.PRNGKey(0)
    obj, sound = 8, 16                   # small sizes consistent with the module
    module = LanguageModuleJAX(obj, sound, key)

    # forward(): size-gated path (tiny params -> fused XLA softmax).
    smP, smQ = module.forward()
    jax.block_until_ready((smP, smQ))

    # Exercise the Pallas kernel itself on both parameter shapes
    # (Q's 16x8 shape produces a 2-step grid, covering the tiled path).
    smP_k = _pallas_row_softmax(module.P)
    smQ_k = _pallas_row_softmax(module.Q)
    jax.block_until_ready((smP_k, smQ_k))

    ref_P = jax.nn.softmax(module.P, axis=-1)
    ref_Q = jax.nn.softmax(module.Q, axis=-1)
    assert smP.shape == (obj, sound) and smQ.shape == (sound, obj)
    assert jnp.allclose(smP, ref_P, atol=1e-6, rtol=1e-6)
    assert jnp.allclose(smQ, ref_Q, atol=1e-6, rtol=1e-6)
    assert jnp.allclose(smP_k, ref_P, atol=1e-5, rtol=1e-5)
    assert jnp.allclose(smQ_k, ref_Q, atol=1e-5, rtol=1e-5)
    assert jnp.allclose(jnp.sum(smP_k, axis=-1), 1.0, atol=1e-5)
    assert jnp.allclose(jnp.sum(smQ_k, axis=-1), 1.0, atol=1e-5)

    print("KERNEL_OK")
</pallas_src>

<mosaic_0001>
module attributes {stable_mosaic.version = 11 : i64} {
  func.func @_row_softmax_kernel(%arg0: i32, %arg1: memref<8x16xf32, #tpu.memory_space<vmem>>, %arg2: memref<8x16xf32, #tpu.memory_space<vmem>>) attributes {dimension_semantics = [#tpu.dimension_semantics<parallel>], iteration_bounds = array<i64: 1>, scalar_prefetch = 0 : i64, scratch_operands = 0 : i64, tpu.core_type = #tpu.core_type<tc>, window_params = [{transform_indices = @transform_0, window_bounds = array<i64: 8, 16>}, {transform_indices = @transform_1, window_bounds = array<i64: 8, 16>}]} {
    %c0 = arith.constant 0 : index
    %c0_0 = arith.constant 0 : index
    %0 = vector.load %arg1[%c0, %c0_0] : memref<8x16xf32, #tpu.memory_space<vmem>>, vector<8x16xf32>
    %cst = arith.constant dense<0xFF800000> : vector<8xf32>
    %1 = vector.multi_reduction <maximumf>, %0, %cst [1] : vector<8x16xf32> to vector<8xf32>
    %2 = vector.shape_cast %1 : vector<8xf32> to vector<8x1xf32>
    %3 = vector.broadcast %2 : vector<8x1xf32> to vector<8x16xf32>
    %4 = arith.subf %0, %3 : vector<8x16xf32>
    %5 = math.exp %4 : vector<8x16xf32>
    %cst_1 = arith.constant dense<0.000000e+00> : vector<8xf32>
    %6 = vector.multi_reduction <add>, %5, %cst_1 [1] : vector<8x16xf32> to vector<8xf32>
    %7 = vector.shape_cast %6 : vector<8xf32> to vector<8x1xf32>
    %8 = vector.broadcast %7 : vector<8x1xf32> to vector<8x16xf32>
    %9 = arith.divf %5, %8 : vector<8x16xf32>
    %c0_2 = arith.constant 0 : index
    %c0_3 = arith.constant 0 : index
    %10 = vector.load %arg2[%c0_2, %c0_3] : memref<8x16xf32, #tpu.memory_space<vmem>>, vector<8x16xf32>
    tpu.vector_store %arg2[%c0_2, %c0_3], %9 {strides = array<i32>} : memref<8x16xf32, #tpu.memory_space<vmem>>, vector<8x16xf32>,
    return
  }
  func.func @transform_0(%arg0: i32) -> (i32, i32) {
    %c0_i32 = arith.constant 0 : i32
    %c0_i32_0 = arith.constant 0 : i32
    return %arg0, %c0_i32 : i32, i32
  }
  func.func @transform_1(%arg0: i32) -> (i32, i32) {
    %c0_i32 = arith.constant 0 : i32
    %c0_i32_0 = arith.constant 0 : i32
    return %arg0, %c0_i32 : i32, i32
  }
}

</mosaic_0001>

<llo_original>
// kernel: _pallas_row_softmax.1
$region0: #{_pallas_row_softmax.1}
  #allocation0 [shape = 'u32[]', space=smem, size = 0x4, offset = 0x4, fixed_abs, tag = 'smem constant byte address 0x4 - core index']
  #allocation1 [shape = 'u32[144,128]{1,0:T(1,128)}', space=vmem, size = 0x12000, scoped, tag = 'internal scratch']
  %s0 = inlined_call_operand.hbm [shape: f32[8,16], index: 0, kind: input, shape index: {}]
  %s1 = inlined_call_operand.hbm [shape: f32[8,16], index: 1, kind: output, shape index: {}]
  %s2 = sld [smem:[#allocation0]]
  $region18: #{_pallas_row_softmax.1} parent=0
    _
  %s4 = ssub.s32 1, %s2
  %s5 = scalar_select 0, %s4, %s2
  $region1: #{_pallas_row_softmax.1} parent=0
    #allocation2 [shape = 'u8[4096]{0}', space=vmem, size = 0x1000, scoped, tag = 'input window, operand 0, single buffered']
    #allocation3 [shape = 's32[1]{0}', space=sflag, size = 0x4, scoped, tag = 'scoped memory for _pallas_row_softmax.1']
    #allocation4 [shape = 's32[1]{0}', space=sflag, size = 0x4, scoped, tag = 'scoped memory for _pallas_row_softmax.1']
    #allocation5 [shape = 'u8[4096]{0}', space=vmem, size = 0x1000, scoped, tag = 'output window, operand 0, single buffered']
    %6 = vsyncpa [#allocation3], 0
    %7 = vsyncpa [#allocation4], 0
    // Predicated region
    $region2: #{_pallas_row_softmax.1} parent=1 // pred_check
      _
    $region3: #{_pallas_row_softmax.1} parent=1 // pred_check_branch
      %9 = sbr.rel (0) target = $region5
    $region4: #{_pallas_row_softmax.1} parent=1 // pred_region
      %s11 = ssub.s32 128, 128
      %12 = vsyncadd [#allocation3], %s11
      %s14 = sshll.u32 [#allocation2], 4
      %s15 = int_to_ptr.vmem [resolvable:$true] %s14
      %17 = dma.hbm_to_vmem [thread:$0]  %s0, 128, %s15, [#allocation3]
    $region5: #{_pallas_row_softmax.1} parent=1 // pred_fallthru
      _
    // Predicated region
    $region6: #{_pallas_row_softmax.1} parent=1 // pred_check
      _
    $region7: #{_pallas_row_softmax.1} parent=1 // pred_check_branch
      %19 = sbr.rel (0) target = $region9
    $region8: #{_pallas_row_softmax.1} parent=1 // pred_region
      %20 = dma.done [#allocation3], 128
    $region9: #{_pallas_row_softmax.1} parent=1 // pred_fallthru
      _
    %v21 = vld [vmem:[#allocation2] sm:$0xff]
    %vm22 = vcmask 130048
    %v23 = vsel %vm22, %v21, -inf
    %24 = vmax.xlane.f32.xlu0 %v23
    %v25 = vpop.xlane.xlu0 %24
    %v26 = vsub.f32 %v21, %v25
    %v27 = vmul.f32 %v26, 1.442695
    %v28 = vpow.pop %v27
    %v29 = vsel %vm22, %v28, 0.0
    %30 = vadd.xlane.f32.xlu0 %v29
    %v31 = vpop.xlane.xlu0 %30
    %v32 = vrcp.pop %v31
    %v33 = vmul.f32 %v28, %v32
    %34 = vst.msk [vmem:[#allocation5] sm:$0xff] %vm22, %v33
    // Predicated region
    $region10: #{_pallas_row_softmax.1} parent=1 // pred_check
      _
    $region11: #{_pallas_row_softmax.1} parent=1 // pred_check_branch
      %36 = sbr.rel (0) target = $region13
    $region12: #{_pallas_row_softmax.1} parent=1 // pred_region
      %s38 = ssub.s32 128, 128
      %39 = vsyncadd [#allocation4], %s38
      %s41 = sshll.u32 [#allocation5], 4
      %s42 = int_to_ptr.vmem [resolvable:$true] %s41
      %44 = dma.vmem_to_hbm [thread:$0]  %s42, 128, %s1, [#allocation4]
    $region13: #{_pallas_row_softmax.1} parent=1 // pred_fallthru
      _
    // Predicated region
    $region14: #{_pallas_row_softmax.1} parent=1 // pred_check
      _
    $region15: #{_pallas_row_softmax.1} parent=1 // pred_check_branch
      %46 = sbr.rel (0) target = $region17
    $region16: #{_pallas_row_softmax.1} parent=1 // pred_region
      %47 = dma.done [#allocation4], 128
    $region17: #{_pallas_row_softmax.1} parent=1 // pred_fallthru
      _
    %48 = vsyncpa [#allocation3], 1
    %49 = vsyncpa [#allocation4], 1

</llo_original>
